<compile_context>
chip_gen: v5e
topology: v5e:2x2
jax: 0.10.0
libtpu: 0.0.40
codegen_flags: <defaults>
</compile_context>

<pallas_src>
import jax
import jax.numpy as jnp
from jax.experimental import pallas as pl
from jax.experimental.pallas import tpu as pltpu


# ---------------------------------------------------------------------------
# Kernel
# ---------------------------------------------------------------------------
def _conv1x1_kernel(w_ref, x_ref, o_ref):
    # w_ref: (C, C)       full weight, resident across the whole grid
    # x_ref: (BT, C, TL)  BT folded batch elements x one lane-dense L tile
    # o_ref: (BT, C, TL)
    w = w_ref[...]
    bt = x_ref.shape[0]
    # Static unroll over the folded batch (BT is capped in the wrapper).
    # Keep the body a pure matmul + store: no elementwise post-ops, so the
    # store path stays unmasked full-width vst on all non-ragged tiles.
    for b in range(bt):
        o_ref[b] = jnp.dot(
            w, x_ref[b], preferred_element_type=jnp.float32
        ).astype(o_ref.dtype)


# ---------------------------------------------------------------------------
# Tiling heuristics
# ---------------------------------------------------------------------------
_TARGET_BLOCK_BYTES = 2 << 20   # ~2 MiB x-block per grid step (HBM-bound sweet spot)
_MAX_BT = 32                    # cap on the static batch unroll inside the kernel
_MIN_TL = 8192                  # don't shrink TL below this just to fold batch


def _round_up(v, m):
    return (v + m - 1) // m * m


def _choose_tiles(N, L, C, itemsize):
    # Total folded lanes (BT * TL) per block needed to hit the byte target.
    lanes_target = max(1024, _TARGET_BLOCK_BYTES // (C * itemsize))
    if L < 128:
        # Tiny L: take the whole axis as one block ("equal to full dim"
        # satisfies the lane-tiling constraint even when L % 128 != 0).
        tl = L
    else:
        fold_hint = max(1, min(N, _MAX_BT))
        tl_cap = max(_MIN_TL, _round_up(-(-lanes_target // fold_hint), 128))
        tl_cap = max(128, (min(tl_cap, lanes_target) // 128) * 128)
        # Keep TL <= L (never an oversize block); any L remainder becomes a
        # single ragged final tile handled by the pipeline.
        tl = min(tl_cap, (L // 128) * 128)
    bt = max(1, min(_MAX_BT, lanes_target // max(tl, 1), N))
    return bt, tl


# ---------------------------------------------------------------------------
# Pallas wrapper for the 1x1 conv (per-batch channel-mixing matmul)
# ---------------------------------------------------------------------------
def _conv1x1_pallas(x, w):
    N, C, L = x.shape
    itemsize = jnp.dtype(x.dtype).itemsize

    BT, TL = _choose_tiles(N, L, C, itemsize)
    grid = (pl.cdiv(N, BT), pl.cdiv(L, TL))

    # VMEM budget: x + out blocks double-buffered plus the resident weight,
    # with margin, kept well below v7x's 64 MiB per-core VMEM.
    blk_bytes = BT * C * TL * itemsize
    vmem_limit = int(min(48 << 20, max(16 << 20, 6 * blk_bytes)))

    cost = pl.CostEstimate(
        flops=2 * N * C * C * L,
        transcendentals=0,
        bytes_accessed=2 * N * C * L * itemsize + C * C * itemsize,
    )

    return pl.pallas_call(
        _conv1x1_kernel,
        out_shape=jax.ShapeDtypeStruct((N, C, L), x.dtype),
        grid=grid,
        in_specs=[
            # Constant block index -> weight DMA'd once, stays resident.
            pl.BlockSpec((C, C), lambda n, l: (0, 0)),
            pl.BlockSpec((BT, C, TL), lambda n, l: (n, 0, l)),
        ],
        out_specs=pl.BlockSpec((BT, C, TL), lambda n, l: (n, 0, l)),
        compiler_params=pltpu.CompilerParams(
            dimension_semantics=("parallel", "parallel"),
            vmem_limit_bytes=vmem_limit,
        ),
        cost_estimate=cost,
    )(w, x)


# ---------------------------------------------------------------------------
# Module-equivalent forward (LU_decomposed=False)
# ---------------------------------------------------------------------------
def invertible_conv1x1_forward(x, weight, logdet=None, reverse=False):
    """Forward pass of InvertibleConv1x1 (LU_decomposed=False).

    x:      (N, C, L) float32   -- NCL layout (PyTorch conv1d convention)
    weight: (C, C)    float32
    Returns (z, logdet) just like the PyTorch module.
    """
    _, _, L = x.shape

    if not reverse:
        w_eff = weight
        # dlogdet = slogdet(W)[1] * pixels(input); pixels == L for conv1d input.
        dlogdet = jnp.linalg.slogdet(weight)[1] * L
    else:
        # TODO(synk): PyTorch inverts in float64 (.double().inverse()); TPU has
        # no f64, so the inverse here is float32 (small precision gap vs reference).
        w_eff = jnp.linalg.inv(weight)
        dlogdet = jnp.zeros((), jnp.float32)  # module uses dlogdet = 0 on reverse

    z = _conv1x1_pallas(x, w_eff)

    if logdet is not None:
        logdet = logdet + dlogdet if not reverse else logdet - dlogdet
    return z, logdet


if __name__ == "__main__":
    # Deterministic parameter init (mirrors __init__: orthogonal init via QR of randn).
    num_channels = 8
    batch = 2
    length = 256

    key = jax.random.PRNGKey(0)
    k_w, k_x, k_ld = jax.random.split(key, 3)

    w_rand = jax.random.normal(k_w, (num_channels, num_channels), dtype=jnp.float32)
    weight = jnp.linalg.qr(w_rand)[0].astype(jnp.float32)  # orthogonal CxC weight

    x = jax.random.normal(k_x, (batch, num_channels, length), dtype=jnp.float32)
    logdet_in = jax.random.normal(k_ld, (batch,), dtype=jnp.float32)

    z, logdet_out = invertible_conv1x1_forward(x, weight, logdet=logdet_in, reverse=False)
    z = jax.block_until_ready(z)
    logdet_out = jax.block_until_ready(logdet_out)

    # Sanity check against plain-JAX reference (1x1 conv == einsum over channels).
    z_ref = jnp.einsum("oc,ncl->nol", weight, x)
    dlogdet_ref = jnp.linalg.slogdet(weight)[1] * length
    logdet_ref = logdet_in + dlogdet_ref

    assert z.shape == (batch, num_channels, length)
    assert jnp.allclose(z, z_ref, atol=1e-4, rtol=1e-5)
    assert jnp.allclose(logdet_out, logdet_ref, atol=1e-4, rtol=1e-5)

    # Ragged path: L not a multiple of 128 (final partial lane tile, no padding copies).
    length2 = 200
    x2 = jax.random.normal(k_x, (batch, num_channels, length2), dtype=jnp.float32)
    z2, _ = invertible_conv1x1_forward(x2, weight, logdet=None, reverse=False)
    z2 = jax.block_until_ready(z2)
    z2_ref = jnp.einsum("oc,ncl->nol", weight, x2)
    assert z2.shape == (batch, num_channels, length2)
    assert jnp.allclose(z2, z2_ref, atol=1e-4, rtol=1e-5)

    # Reverse path: applying the inverse weight should recover x (module semantics:
    # dlogdet = 0 on reverse, logdet unchanged by subtraction of 0).
    x_rec, logdet_rev = invertible_conv1x1_forward(z, weight, logdet=logdet_out, reverse=True)
    x_rec = jax.block_until_ready(x_rec)
    assert jnp.allclose(x_rec, x, atol=1e-3, rtol=1e-4)
    assert jnp.allclose(logdet_rev, logdet_out, atol=1e-5)

    print("KERNEL_OK")
</pallas_src>

<mosaic_0001>
module attributes {stable_mosaic.version = 11 : i64} {
  func.func @_conv1x1_kernel(%arg0: i32, %arg1: i32, %arg2: memref<8x8xf32, #tpu.memory_space<vmem>>, %arg3: memref<2x8x256xf32, #tpu.memory_space<vmem>>, %arg4: memref<2x8x256xf32, #tpu.memory_space<vmem>>) attributes {dimension_semantics = [#tpu.dimension_semantics<parallel>, #tpu.dimension_semantics<parallel>], iteration_bounds = array<i64: 1, 1>, scalar_prefetch = 0 : i64, scratch_operands = 0 : i64, tpu.core_type = #tpu.core_type<tc>, window_params = [{pipeline_mode = #tpu.pipeline_mode<synchronous>, transform_indices = @transform_0, window_bounds = array<i64: 8, 8>}, {transform_indices = @transform_1, window_bounds = array<i64: 2, 8, 256>}, {transform_indices = @transform_2, window_bounds = array<i64: 2, 8, 256>}]} {
    %c0 = arith.constant 0 : index
    %c0_0 = arith.constant 0 : index
    %0 = vector.load %arg2[%c0, %c0_0] : memref<8x8xf32, #tpu.memory_space<vmem>>, vector<8x8xf32>
    %c0_1 = arith.constant 0 : index
    %c0_2 = arith.constant 0 : index
    %c0_3 = arith.constant 0 : index
    %1 = vector.load %arg3[%c0_1, %c0_2, %c0_3] : memref<2x8x256xf32, #tpu.memory_space<vmem>>, vector<1x8x256xf32>
    %2 = vector.shape_cast %1 : vector<1x8x256xf32> to vector<8x256xf32>
    %cst = arith.constant dense<0.000000e+00> : vector<8x256xf32>
    %3 = tpu.matmul %0, %2, %cst {dimension_numbers = #tpu.dot_dimension_numbers<[1], [0], [0], [1], [0, 0, 1, 1], [], []>} : vector<8x8xf32>, vector<8x256xf32>, vector<8x256xf32> -> vector<8x256xf32>
    %c0_4 = arith.constant 0 : index
    %c0_5 = arith.constant 0 : index
    %c0_6 = arith.constant 0 : index
    %4 = vector.load %arg4[%c0_4, %c0_5, %c0_6] : memref<2x8x256xf32, #tpu.memory_space<vmem>>, vector<1x8x256xf32>
    %5 = vector.shape_cast %4 : vector<1x8x256xf32> to vector<8x256xf32>
    %6 = vector.shape_cast %3 : vector<8x256xf32> to vector<1x8x256xf32>
    tpu.vector_store %arg4[%c0_4, %c0_5, %c0_6], %6 {strides = array<i32>} : memref<2x8x256xf32, #tpu.memory_space<vmem>>, vector<1x8x256xf32>,
    %c1 = arith.constant 1 : index
    %c0_7 = arith.constant 0 : index
    %c0_8 = arith.constant 0 : index
    %7 = vector.load %arg3[%c1, %c0_7, %c0_8] : memref<2x8x256xf32, #tpu.memory_space<vmem>>, vector<1x8x256xf32>
    %8 = vector.shape_cast %7 : vector<1x8x256xf32> to vector<8x256xf32>
    %cst_9 = arith.constant dense<0.000000e+00> : vector<8x256xf32>
    %9 = tpu.matmul %0, %8, %cst_9 {dimension_numbers = #tpu.dot_dimension_numbers<[1], [0], [0], [1], [0, 0, 1, 1], [], []>} : vector<8x8xf32>, vector<8x256xf32>, vector<8x256xf32> -> vector<8x256xf32>
    %c1_10 = arith.constant 1 : index
    %c0_11 = arith.constant 0 : index
    %c0_12 = arith.constant 0 : index
    %10 = vector.load %arg4[%c1_10, %c0_11, %c0_12] : memref<2x8x256xf32, #tpu.memory_space<vmem>>, vector<1x8x256xf32>
    %11 = vector.shape_cast %10 : vector<1x8x256xf32> to vector<8x256xf32>
    %12 = vector.shape_cast %9 : vector<8x256xf32> to vector<1x8x256xf32>
    tpu.vector_store %arg4[%c1_10, %c0_11, %c0_12], %12 {strides = array<i32>} : memref<2x8x256xf32, #tpu.memory_space<vmem>>, vector<1x8x256xf32>,
    return
  }
  func.func @transform_0(%arg0: i32, %arg1: i32) -> (i32, i32) {
    %c0_i32 = arith.constant 0 : i32
    %c0_i32_0 = arith.constant 0 : i32
    %c0_i32_1 = arith.constant 0 : i32
    return %c0_i32, %c0_i32_0 : i32, i32
  }
  func.func @transform_1(%arg0: i32, %arg1: i32) -> (i32, i32, i32) {
    %c0_i32 = arith.constant 0 : i32
    %c0_i32_0 = arith.constant 0 : i32
    return %arg0, %c0_i32, %arg1 : i32, i32, i32
  }
  func.func @transform_2(%arg0: i32, %arg1: i32) -> (i32, i32, i32) {
    %c0_i32 = arith.constant 0 : i32
    %c0_i32_0 = arith.constant 0 : i32
    return %arg0, %c0_i32, %arg1 : i32, i32, i32
  }
}

</mosaic_0001>

<llo_original>
// kernel: tpu_custom_call.1
$region0: #{tpu_custom_call.1}
  #allocation0 [shape = 'u32[]', space=smem, size = 0x4, offset = 0x4, fixed_abs, tag = 'smem constant byte address 0x4 - core index']
  #allocation1 [shape = 'u32[72,128]{1,0:T(1,128)}', space=vmem, size = 0x9000, scoped, tag = 'internal scratch']
  %s0 = inlined_call_operand.hbm [shape: f32[8,8], index: 0, kind: input, shape index: {}]
  %s1 = inlined_call_operand.hbm [shape: f32[2,8,256], index: 1, kind: input, shape index: {}]
  %s2 = inlined_call_operand.hbm [shape: f32[2,8,256], index: 2, kind: output, shape index: {}]
  %s3 = sld [smem:[#allocation0]]
  $region26: #{tpu_custom_call.1} parent=0
    _
  %s5 = ssub.s32 1, %s3
  %s6 = scalar_select 0, %s5, %s3
  $region1: #{tpu_custom_call.1} parent=0
    #allocation2 [shape = 'u8[4096]{0}', space=vmem, size = 0x1000, scoped, tag = 'input window, operand 0, single buffered']
    #allocation3 [shape = 's32[1]{0}', space=sflag, size = 0x4, scoped, tag = 'scoped memory for tpu_custom_call.1']
    #allocation4 [shape = 's32[1]{0}', space=sflag, size = 0x4, scoped, tag = 'scoped memory for tpu_custom_call.1']
    #allocation5 [shape = 'u8[16384]{0}', space=vmem, size = 0x4000, scoped, tag = 'input window, operand 1, single buffered']
    #allocation6 [shape = 's32[1]{0}', space=sflag, size = 0x4, scoped, tag = 'scoped memory for tpu_custom_call.1']
    #allocation7 [shape = 'u8[16384]{0}', space=vmem, size = 0x4000, scoped, tag = 'output window, operand 0, single buffered']
    %7 = vsyncpa [#allocation3], 0
    %8 = vsyncpa [#allocation6], 0
    %9 = vsyncpa [#allocation4], 0
    // Predicated region
    $region2: #{tpu_custom_call.1} parent=1 // pred_check
      _
    $region3: #{tpu_custom_call.1} parent=1 // pred_check_branch
      %11 = sbr.rel (0) target = $region5
    $region4: #{tpu_custom_call.1} parent=1 // pred_region
      %13 = vsyncadd [#allocation3], 0
      %s15 = sshll.u32 %s0, 4
      %s16 = int_to_ptr.hbm [resolvable:$true] %s15
      %s17 = sshll.u32 [#allocation2], 4
      %s18 = int_to_ptr.vmem [resolvable:$true] %s17
      %20 = dma.hbm_to_vmem [thread:$0]  %s16, 128, %s18, [#allocation3]
    $region5: #{tpu_custom_call.1} parent=1 // pred_fallthru
      _
    // Predicated region
    $region6: #{tpu_custom_call.1} parent=1 // pred_check
      _
    $region7: #{tpu_custom_call.1} parent=1 // pred_check_branch
      %22 = sbr.rel (0) target = $region9
    $region8: #{tpu_custom_call.1} parent=1 // pred_region
      %24 = vsyncadd [#allocation6], 0
      %s25 = sshll.u32 %s1, 4
      %s26 = int_to_ptr.hbm [resolvable:$true] %s25
      %s27 = sshll.u32 [#allocation5], 4
      %s28 = int_to_ptr.vmem [resolvable:$true] %s27
      %33 = dma.hbm_to_vmem [thread:$0]  %s26, 512, %s28, [#allocation6], 256, 256, 16
    $region9: #{tpu_custom_call.1} parent=1 // pred_fallthru
      _
    // Predicated region
    $region10: #{tpu_custom_call.1} parent=1 // pred_check
      _
    $region11: #{tpu_custom_call.1} parent=1 // pred_check_branch
      %35 = sbr.rel (0) target = $region13
    $region12: #{tpu_custom_call.1} parent=1 // pred_region
      %37 = dma.done [#allocation3], 128
    $region13: #{tpu_custom_call.1} parent=1 // pred_fallthru
      _
    // Predicated region
    $region14: #{tpu_custom_call.1} parent=1 // pred_check
      _
    $region15: #{tpu_custom_call.1} parent=1 // pred_check_branch
      %39 = sbr.rel (0) target = $region17
    $region16: #{tpu_custom_call.1} parent=1 // pred_region
      %41 = dma.done [#allocation6], 512
    $region17: #{tpu_custom_call.1} parent=1 // pred_fallthru
      _
    %v42 = vld [vmem:[#allocation2] sm:$0xff]
    %v43 = vld [vmem:[#allocation5] sm:$0xff]
    %v44 = vld [vmem:[#allocation5 + $0x8] sm:$0xff]
    %vm45 = vcmask 64512
    %v47 = vsel %vm45, %v42, 0
    %49 = vmatpush.msra.mxu0 0.0
    %50 = vmatpush.msra.mxu0 0.0
    %51 = vmatpush.msra.mxu0 0.0
    %52 = vmatpush.msra.mxu0 0.0
    %53 = vmatpush.msra.mxu0 0.0
    %54 = vmatpush.msra.mxu0 0.0
    %55 = vmatpush.msra.mxu0 0.0
    %56 = vmatpush.msra.mxu0 0.0
    %57 = vmatpush.msra.mxu0 0.0
    %58 = vmatpush.msra.mxu0 0.0
    %59 = vmatpush.msra.mxu0 0.0
    %60 = vmatpush.msra.mxu0 0.0
    %61 = vmatpush.msra.mxu0 0.0
    %62 = vmatpush.msra.mxu0 0.0
    %63 = vmatpush.msra.mxu0 0.0
    %64 = vmatpush.msra.mxu0 %v43
    %65 = vmatmul.f32.gmra.mxu0 %v47
    %v66 = vpop.f32.mrf.mxu0
    %v67 = vadd.f32 0.0, %v66
    %68 = vdwg.mxu0
    %69 = vmatpush.msra.mxu0 0.0
    %70 = vmatpush.msra.mxu0 0.0
    %71 = vmatpush.msra.mxu0 0.0
    %72 = vmatpush.msra.mxu0 0.0
    %73 = vmatpush.msra.mxu0 0.0
    %74 = vmatpush.msra.mxu0 0.0
    %75 = vmatpush.msra.mxu0 0.0
    %76 = vmatpush.msra.mxu0 0.0
    %77 = vmatpush.msra.mxu0 0.0
    %78 = vmatpush.msra.mxu0 0.0
    %79 = vmatpush.msra.mxu0 0.0
    %80 = vmatpush.msra.mxu0 0.0
    %81 = vmatpush.msra.mxu0 0.0
    %82 = vmatpush.msra.mxu0 0.0
    %83 = vmatpush.msra.mxu0 0.0
    %84 = vmatpush.msra.mxu0 %v44
    %85 = vmatmul.f32.gmra.mxu0 %v47
    %v86 = vpop.f32.mrf.mxu0
    %v87 = vadd.f32 0.0, %v86
    %88 = vdwg.mxu0
    %89 = vst [vmem:[#allocation7] sm:$0xff] %v67
    %90 = vst [vmem:[#allocation7 + $0x8] sm:$0xff] %v87
    %s91 = scalar_lea.vmem [#allocation5], 16
    %v92 = vld [vmem:[%s91] sm:$0xff]
    %v93 = vld [vmem:[%s91 + $0x8] sm:$0xff]
    %94 = vmatpush.msra.mxu0 0.0
    %95 = vmatpush.msra.mxu0 0.0
    %96 = vmatpush.msra.mxu0 0.0
    %97 = vmatpush.msra.mxu0 0.0
    %98 = vmatpush.msra.mxu0 0.0
    %99 = vmatpush.msra.mxu0 0.0
    %100 = vmatpush.msra.mxu0 0.0
    %101 = vmatpush.msra.mxu0 0.0
    %102 = vmatpush.msra.mxu0 0.0
    %103 = vmatpush.msra.mxu0 0.0
    %104 = vmatpush.msra.mxu0 0.0
    %105 = vmatpush.msra.mxu0 0.0
    %106 = vmatpush.msra.mxu0 0.0
    %107 = vmatpush.msra.mxu0 0.0
    %108 = vmatpush.msra.mxu0 0.0
    %109 = vmatpush.msra.mxu0 %v92
    %110 = vmatmul.f32.gmra.mxu0 %v47
    %v111 = vpop.f32.mrf.mxu0
    %v112 = vadd.f32 0.0, %v111
    %113 = vdwg.mxu0
    %114 = vmatpush.msra.mxu0 0.0
    %115 = vmatpush.msra.mxu0 0.0
    %116 = vmatpush.msra.mxu0 0.0
    %117 = vmatpush.msra.mxu0 0.0
    %118 = vmatpush.msra.mxu0 0.0
    %119 = vmatpush.msra.mxu0 0.0
    %120 = vmatpush.msra.mxu0 0.0
    %121 = vmatpush.msra.mxu0 0.0
    %122 = vmatpush.msra.mxu0 0.0
    %123 = vmatpush.msra.mxu0 0.0
    %124 = vmatpush.msra.mxu0 0.0
    %125 = vmatpush.msra.mxu0 0.0
    %126 = vmatpush.msra.mxu0 0.0
    %127 = vmatpush.msra.mxu0 0.0
    %128 = vmatpush.msra.mxu0 0.0
    %129 = vmatpush.msra.mxu0 %v93
    %130 = vmatmul.f32.gmra.mxu0 %v47
    %v131 = vpop.f32.mrf.mxu0
    %v132 = vadd.f32 0.0, %v131
    %133 = vdwg.mxu0
    %s134 = scalar_lea.vmem [#allocation7], 16
    %135 = vst [vmem:[%s134] sm:$0xff] %v112
    %136 = vst [vmem:[%s134 + $0x8] sm:$0xff] %v132
    // Predicated region
    $region18: #{tpu_custom_call.1} parent=1 // pred_check
      _
    $region19: #{tpu_custom_call.1} parent=1 // pred_check_branch
      %138 = sbr.rel (0) target = $region21
    $region20: #{tpu_custom_call.1} parent=1 // pred_region
      %140 = vsyncadd [#allocation4], 0
      %s141 = sshll.u32 [#allocation7], 4
      %s142 = int_to_ptr.vmem [resolvable:$true] %s141
      %s143 = sshll.u32 %s2, 4
      %s144 = int_to_ptr.hbm [resolvable:$true] %s143
      %149 = dma.vmem_to_hbm [thread:$0]  %s142, 512, %s144, [#allocation4], 256, 256, 16
    $region21: #{tpu_custom_call.1} parent=1 // pred_fallthru
      _
    // Predicated region
    $region22: #{tpu_custom_call.1} parent=1 // pred_check
      _
    $region23: #{tpu_custom_call.1} parent=1 // pred_check_branch
      %151 = sbr.rel (0) target = $region25
    $region24: #{tpu_custom_call.1} parent=1 // pred_region
      %153 = dma.done [#allocation4], 512
    $region25: #{tpu_custom_call.1} parent=1 // pred_fallthru
      _
    %154 = vsyncpa [#allocation3], 1
    %155 = vsyncpa [#allocation6], 1
    %156 = vsyncpa [#allocation4], 1

</llo_original>
